<compile_context>
chip_gen: v6e
topology: v6e:2x2x1
jax: 0.10.0
libtpu: 0.0.40
codegen_flags: <defaults>
</compile_context>

<pallas_src>
import jax
import jax.numpy as jnp
from jax.experimental import pallas as pl
from jax.experimental.pallas import tpu as pltpu


def _round_up(x, m):
    return (x + m - 1) // m * m


# ---------------------------------------------------------------- kernel ----

def _mlp_kernel(x_ref, w1_ref, b1_ref, w2_ref, b2_ref, w3_ref, b3_ref,
                pmask_ref, vsel_ref, out_ref):
    # x:     (tb, P)      f32  (cast to bf16 here, right before the MXU)
    # wKt:   (K, N_pad)   bf16 (fc4 fused into column P of w3t)
    # bK:    (1, N_pad)   f32
    # pmask: (1, P_pad)   f32  additive softmax mask: 0 valid cols, -1e30 pad + value col
    # vsel:  (1, P_pad)   f32  one-hot at the fused value column (index P)
    # out:   (tb, P_pad)  f32  cols [0,P) = softmax probs, col P = tanh(value)
    x = x_ref[...].astype(w1_ref.dtype)

    h1 = jnp.dot(x, w1_ref[...], preferred_element_type=jnp.float32) + b1_ref[...]
    h1 = jnp.maximum(h1, 0.0).astype(w2_ref.dtype)

    h2 = jnp.dot(h1, w2_ref[...], preferred_element_type=jnp.float32) + b2_ref[...]
    h2 = jnp.maximum(h2, 0.0).astype(w3_ref.dtype)

    # fused fc3 (+ fc4 in column P)
    raw = jnp.dot(h2, w3_ref[...], preferred_element_type=jnp.float32) + b3_ref[...]

    # ----- policy head: relu -> masked softmax (pad/value cols come out exactly 0)
    logits = jnp.maximum(raw, 0.0) + pmask_ref[...]
    m = jnp.max(logits, axis=1, keepdims=True)
    e = jnp.exp(logits - m)
    denom = jnp.sum(e, axis=1, keepdims=True)
    probs = e * pl.reciprocal(denom, approx=True)

    # ----- value head: tanh of the fused fc4 column, written into its padded column
    v_raw = jnp.sum(raw * vsel_ref[...], axis=1, keepdims=True)
    out_ref[...] = probs + jnp.tanh(v_raw) * vsel_ref[...]


# --------------------------------------------------------------- wrapper ----

def _resident_spec(shape):
    """Weights/biases/masks: constant index_map -> DMA'd once, VMEM-resident.
    Buffered(1) halves their VMEM footprint (no pointless double buffer)."""
    idx = lambda i: (0, 0)
    try:
        return pl.BlockSpec(shape, idx, pipeline_mode=pl.Buffered(1))
    except (AttributeError, TypeError):   # older jax without pipeline_mode/Buffered
        return pl.BlockSpec(shape, idx)


def mlp_forward(x, params, *, board_size, block_b=256):
    """x: (B, board, board) or (B, P) float32, like the PyTorch module."""
    P = board_size ** 2
    B = x.shape[0]
    x2 = jnp.reshape(x, (B, -1))
    if x2.shape[1] != P:
        raise ValueError("moves and board don't match")

    H1_pad = params["w1t"].shape[1]
    H2_pad = params["w2t"].shape[1]
    P_pad = params["w3t"].shape[1]

    # Batch tile: multiple of 16 (bf16 sublane tile); default leans toward 256
    # (full MXU M on v6e/v7x).  If the whole rounded batch fits in one tile but
    # is big enough, split into two tiles so both v7x TensorCores get work.
    B16 = _round_up(B, 16)
    tb = max(16, min(_round_up(block_b, 16), B16))
    if B16 // tb < 2 and B16 >= 32:
        tb = _round_up((B16 + 1) // 2, 16)
    B_pad = _round_up(B, tb)

    x_in = x2 if B_pad == B else jnp.pad(x2, ((0, B_pad - B), (0, 0)))

    out = pl.pallas_call(
        _mlp_kernel,
        grid=(B_pad // tb,),
        in_specs=[
            pl.BlockSpec((tb, P), lambda i: (i, 0)),            # activations: batch-tiled
            _resident_spec((P, H1_pad)),      _resident_spec((1, H1_pad)),
            _resident_spec((H1_pad, H2_pad)), _resident_spec((1, H2_pad)),
            _resident_spec((H2_pad, P_pad)),  _resident_spec((1, P_pad)),
            _resident_spec((1, P_pad)),       _resident_spec((1, P_pad)),
        ],
        out_specs=pl.BlockSpec((tb, P_pad), lambda i: (i, 0)),
        out_shape=jax.ShapeDtypeStruct((B_pad, P_pad), jnp.float32),
        compiler_params=pltpu.CompilerParams(
            dimension_semantics=("parallel",),
            vmem_limit_bytes=32 * 1024 * 1024),
    )(x_in, params["w1t"], params["b1"], params["w2t"], params["b2"],
      params["w3t"], params["b3"], params["pmask"], params["vsel"])

    return out[:B, :P], out[:B, P:P + 1]


# ------------------------------------------------------------------ setup ---

def init_raw_params(key, board_size, num_hidden1, num_hidden2):
    """PyTorch-style Linear init: U(-1/sqrt(fan_in), 1/sqrt(fan_in)); weights (out, in)."""
    P = board_size ** 2
    ks = jax.random.split(key, 8)

    def u(k, shape, fan_in):
        bound = 1.0 / float(fan_in) ** 0.5
        return jax.random.uniform(k, shape, jnp.float32, -bound, bound)

    return dict(
        w1=u(ks[0], (num_hidden1, P), P),                      b1=u(ks[1], (num_hidden1,), P),
        w2=u(ks[2], (num_hidden2, num_hidden1), num_hidden1),  b2=u(ks[3], (num_hidden2,), num_hidden1),
        w3=u(ks[4], (P, num_hidden2), num_hidden2),            b3=u(ks[5], (P,), num_hidden2),
        w4=u(ks[6], (1, num_hidden2), num_hidden2),            b4=u(ks[7], (1,), num_hidden2),
    )


def pack_params(raw, board_size):
    """Transpose to (in, out), zero-pad hidden/output dims to multiples of 128,
    fuse fc4 into column P of fc3, cast matmul operands to bf16 (biases f32),
    and precompute the softmax additive mask + value-column one-hot."""
    P = board_size ** 2
    H1, H2 = raw["w1"].shape[0], raw["w2"].shape[0]
    H1_pad, H2_pad = _round_up(H1, 128), _round_up(H2, 128)
    P_pad = _round_up(P + 1, 128)          # +1: room for the fused value (fc4) column

    w1t = jnp.zeros((P, H1_pad), jnp.float32).at[:, :H1].set(raw["w1"].T)
    b1 = jnp.zeros((1, H1_pad), jnp.float32).at[0, :H1].set(raw["b1"])
    w2t = jnp.zeros((H1_pad, H2_pad), jnp.float32).at[:H1, :H2].set(raw["w2"].T)
    b2 = jnp.zeros((1, H2_pad), jnp.float32).at[0, :H2].set(raw["b2"])

    # fc3 and fc4 fused: column index P of w3t / b3 holds fc4
    w3t = (jnp.zeros((H2_pad, P_pad), jnp.float32)
           .at[:H2, :P].set(raw["w3"].T)
           .at[:H2, P].set(raw["w4"][0]))
    b3 = (jnp.zeros((1, P_pad), jnp.float32)
          .at[0, :P].set(raw["b3"])
          .at[0, P].set(raw["b4"][0]))

    col = jnp.arange(P_pad)
    pmask = jnp.where(col < P, 0.0, -1e30).astype(jnp.float32)[None, :]
    vsel = (col == P).astype(jnp.float32)[None, :]

    return dict(
        w1t=w1t.astype(jnp.bfloat16), b1=b1,
        w2t=w2t.astype(jnp.bfloat16), b2=b2,
        w3t=w3t.astype(jnp.bfloat16), b3=b3,
        pmask=pmask, vsel=vsel,
    )


def mlp_reference(x, raw):
    """Pure-JAX reference with matching bf16-matmul numerics."""
    x2 = jnp.reshape(x, (x.shape[0], -1)).astype(jnp.float32)

    def lin(h, w, b):
        return jnp.dot(h.astype(jnp.bfloat16), w.T.astype(jnp.bfloat16),
                       preferred_element_type=jnp.float32) + b

    h1 = jnp.maximum(lin(x2, raw["w1"], raw["b1"]), 0.0)
    h2 = jnp.maximum(lin(h1, raw["w2"], raw["b2"]), 0.0)
    logits = jnp.maximum(lin(h2, raw["w3"], raw["b3"]), 0.0)
    p = jax.nn.softmax(logits, axis=1)
    v = jnp.tanh(lin(h2, raw["w4"], raw["b4"]))
    return p, v


if __name__ == "__main__":
    board_size = 8                          # small stand-in for the module default 15
    num_hidden1, num_hidden2 = 256, 128     # small stand-ins for 2000 / 1000
    B = 64

    key = jax.random.PRNGKey(0)
    k_par, k_in = jax.random.split(key)

    raw = init_raw_params(k_par, board_size, num_hidden1, num_hidden2)
    params = pack_params(raw, board_size)
    x = jax.random.normal(k_in, (B, board_size, board_size), jnp.float32)

    p, v = mlp_forward(x, params, board_size=board_size)   # -> 2 batch tiles of 32
    p, v = jax.block_until_ready((p, v))

    P = board_size ** 2
    assert p.shape == (B, P) and v.shape == (B, 1)
    assert bool(jnp.all(jnp.isfinite(p))) and bool(jnp.all(jnp.isfinite(v)))
    # softmax rows sum to 1 (approx reciprocal on EUP -> relaxed tolerance)
    assert bool(jnp.allclose(jnp.sum(p, axis=1), 1.0, atol=5e-3))
    assert bool(jnp.all(jnp.abs(v) <= 1.0 + 1e-6))

    # loose parity check against a pure-JAX reference with the same bf16 numerics
    p_ref, v_ref = mlp_reference(x, raw)
    assert bool(jnp.allclose(p, p_ref, atol=2e-2))
    assert bool(jnp.allclose(v, v_ref, atol=2e-2))

    print("KERNEL_OK")
</pallas_src>

<mosaic_0001>
module attributes {stable_mosaic.version = 11 : i64} {
  func.func @_mlp_kernel(%arg0: i32, %arg1: memref<32x64xf32, #tpu.memory_space<vmem>>, %arg2: memref<64x256xbf16, #tpu.memory_space<vmem>>, %arg3: memref<1x256xf32, #tpu.memory_space<vmem>>, %arg4: memref<256x128xbf16, #tpu.memory_space<vmem>>, %arg5: memref<1x128xf32, #tpu.memory_space<vmem>>, %arg6: memref<128x128xbf16, #tpu.memory_space<vmem>>, %arg7: memref<1x128xf32, #tpu.memory_space<vmem>>, %arg8: memref<1x128xf32, #tpu.memory_space<vmem>>, %arg9: memref<1x128xf32, #tpu.memory_space<vmem>>, %arg10: memref<32x128xf32, #tpu.memory_space<vmem>>) attributes {dimension_semantics = [#tpu.dimension_semantics<parallel>], iteration_bounds = array<i64: 2>, scalar_prefetch = 0 : i64, scratch_operands = 0 : i64, tpu.core_type = #tpu.core_type<tc>, window_params = [{transform_indices = @transform_0, window_bounds = array<i64: 32, 64>}, {pipeline_mode = #tpu.pipeline_mode<synchronous>, transform_indices = @transform_1, window_bounds = array<i64: 64, 256>}, {pipeline_mode = #tpu.pipeline_mode<synchronous>, transform_indices = @transform_2, window_bounds = array<i64: 1, 256>}, {pipeline_mode = #tpu.pipeline_mode<synchronous>, transform_indices = @transform_3, window_bounds = array<i64: 256, 128>}, {pipeline_mode = #tpu.pipeline_mode<synchronous>, transform_indices = @transform_4, window_bounds = array<i64: 1, 128>}, {pipeline_mode = #tpu.pipeline_mode<synchronous>, transform_indices = @transform_5, window_bounds = array<i64: 128, 128>}, {pipeline_mode = #tpu.pipeline_mode<synchronous>, transform_indices = @transform_6, window_bounds = array<i64: 1, 128>}, {pipeline_mode = #tpu.pipeline_mode<synchronous>, transform_indices = @transform_7, window_bounds = array<i64: 1, 128>}, {pipeline_mode = #tpu.pipeline_mode<synchronous>, transform_indices = @transform_8, window_bounds = array<i64: 1, 128>}, {transform_indices = @transform_9, window_bounds = array<i64: 32, 128>}]} {
    %c0 = arith.constant 0 : index
    %c0_0 = arith.constant 0 : index
    %0 = vector.load %arg1[%c0, %c0_0] : memref<32x64xf32, #tpu.memory_space<vmem>>, vector<32x64xf32>
    %1 = arith.truncf %0 : vector<32x64xf32> to vector<32x64xbf16>
    %c0_1 = arith.constant 0 : index
    %c0_2 = arith.constant 0 : index
    %2 = vector.load %arg2[%c0_1, %c0_2] : memref<64x256xbf16, #tpu.memory_space<vmem>>, vector<64x256xbf16>
    %cst = arith.constant dense<0.000000e+00> : vector<32x256xf32>
    %3 = tpu.matmul %1, %2, %cst {dimension_numbers = #tpu.dot_dimension_numbers<[1], [0], [0], [1], [0, 0, 1, 1], [], []>} : vector<32x64xbf16>, vector<64x256xbf16>, vector<32x256xf32> -> vector<32x256xf32>
    %c0_3 = arith.constant 0 : index
    %c0_4 = arith.constant 0 : index
    %4 = vector.load %arg3[%c0_3, %c0_4] : memref<1x256xf32, #tpu.memory_space<vmem>>, vector<1x256xf32>
    %5 = vector.broadcast %4 : vector<1x256xf32> to vector<32x256xf32>
    %6 = arith.addf %3, %5 : vector<32x256xf32>
    %cst_5 = arith.constant 0.000000e+00 : f32
    %7 = vector.broadcast %cst_5 : f32 to vector<32x256xf32>
    %8 = arith.maximumf %6, %7 : vector<32x256xf32>
    %9 = arith.truncf %8 : vector<32x256xf32> to vector<32x256xbf16>
    %c0_6 = arith.constant 0 : index
    %c0_7 = arith.constant 0 : index
    %10 = vector.load %arg4[%c0_6, %c0_7] : memref<256x128xbf16, #tpu.memory_space<vmem>>, vector<256x128xbf16>
    %cst_8 = arith.constant dense<0.000000e+00> : vector<32x128xf32>
    %11 = tpu.matmul %9, %10, %cst_8 {dimension_numbers = #tpu.dot_dimension_numbers<[1], [0], [0], [1], [0, 0, 1, 1], [], []>} : vector<32x256xbf16>, vector<256x128xbf16>, vector<32x128xf32> -> vector<32x128xf32>
    %c0_9 = arith.constant 0 : index
    %c0_10 = arith.constant 0 : index
    %12 = vector.load %arg5[%c0_9, %c0_10] : memref<1x128xf32, #tpu.memory_space<vmem>>, vector<1x128xf32>
    %13 = vector.broadcast %12 : vector<1x128xf32> to vector<32x128xf32>
    %14 = arith.addf %11, %13 : vector<32x128xf32>
    %cst_11 = arith.constant 0.000000e+00 : f32
    %15 = vector.broadcast %cst_11 : f32 to vector<32x128xf32>
    %16 = arith.maximumf %14, %15 : vector<32x128xf32>
    %17 = arith.truncf %16 : vector<32x128xf32> to vector<32x128xbf16>
    %c0_12 = arith.constant 0 : index
    %c0_13 = arith.constant 0 : index
    %18 = vector.load %arg6[%c0_12, %c0_13] : memref<128x128xbf16, #tpu.memory_space<vmem>>, vector<128x128xbf16>
    %cst_14 = arith.constant dense<0.000000e+00> : vector<32x128xf32>
    %19 = tpu.matmul %17, %18, %cst_14 {dimension_numbers = #tpu.dot_dimension_numbers<[1], [0], [0], [1], [0, 0, 1, 1], [], []>} : vector<32x128xbf16>, vector<128x128xbf16>, vector<32x128xf32> -> vector<32x128xf32>
    %c0_15 = arith.constant 0 : index
    %c0_16 = arith.constant 0 : index
    %20 = vector.load %arg7[%c0_15, %c0_16] : memref<1x128xf32, #tpu.memory_space<vmem>>, vector<1x128xf32>
    %21 = vector.broadcast %20 : vector<1x128xf32> to vector<32x128xf32>
    %22 = arith.addf %19, %21 : vector<32x128xf32>
    %cst_17 = arith.constant 0.000000e+00 : f32
    %23 = vector.broadcast %cst_17 : f32 to vector<32x128xf32>
    %24 = arith.maximumf %22, %23 : vector<32x128xf32>
    %c0_18 = arith.constant 0 : index
    %c0_19 = arith.constant 0 : index
    %25 = vector.load %arg8[%c0_18, %c0_19] : memref<1x128xf32, #tpu.memory_space<vmem>>, vector<1x128xf32>
    %26 = vector.broadcast %25 : vector<1x128xf32> to vector<32x128xf32>
    %27 = arith.addf %24, %26 : vector<32x128xf32>
    %cst_20 = arith.constant dense<0xFF800000> : vector<32xf32>
    %28 = vector.multi_reduction <maximumf>, %27, %cst_20 [1] : vector<32x128xf32> to vector<32xf32>
    %29 = vector.shape_cast %28 : vector<32xf32> to vector<32x1xf32>
    %30 = vector.broadcast %29 : vector<32x1xf32> to vector<32x128xf32>
    %31 = arith.subf %27, %30 : vector<32x128xf32>
    %32 = math.exp %31 : vector<32x128xf32>
    %cst_21 = arith.constant dense<0.000000e+00> : vector<32xf32>
    %33 = vector.multi_reduction <add>, %32, %cst_21 [1] : vector<32x128xf32> to vector<32xf32>
    %34 = vector.shape_cast %33 : vector<32xf32> to vector<32x1xf32>
    %35 = tpu.reciprocal %34 {approx = true} : vector<32x1xf32> -> vector<32x1xf32>
    %36 = vector.broadcast %35 : vector<32x1xf32> to vector<32x128xf32>
    %37 = arith.mulf %32, %36 : vector<32x128xf32>
    %c0_22 = arith.constant 0 : index
    %c0_23 = arith.constant 0 : index
    %38 = vector.load %arg9[%c0_22, %c0_23] : memref<1x128xf32, #tpu.memory_space<vmem>>, vector<1x128xf32>
    %39 = vector.broadcast %38 : vector<1x128xf32> to vector<32x128xf32>
    %40 = arith.mulf %22, %39 : vector<32x128xf32>
    %cst_24 = arith.constant dense<0.000000e+00> : vector<32xf32>
    %41 = vector.multi_reduction <add>, %40, %cst_24 [1] : vector<32x128xf32> to vector<32xf32>
    %42 = vector.shape_cast %41 : vector<32xf32> to vector<32x1xf32>
    %43 = math.tanh %42 : vector<32x1xf32>
    %c0_25 = arith.constant 0 : index
    %c0_26 = arith.constant 0 : index
    %44 = vector.load %arg9[%c0_25, %c0_26] : memref<1x128xf32, #tpu.memory_space<vmem>>, vector<1x128xf32>
    %45 = vector.broadcast %43 : vector<32x1xf32> to vector<32x128xf32>
    %46 = vector.broadcast %44 : vector<1x128xf32> to vector<32x128xf32>
    %47 = arith.mulf %45, %46 : vector<32x128xf32>
    %48 = arith.addf %37, %47 : vector<32x128xf32>
    %c0_27 = arith.constant 0 : index
    %c0_28 = arith.constant 0 : index
    %49 = vector.load %arg10[%c0_27, %c0_28] : memref<32x128xf32, #tpu.memory_space<vmem>>, vector<32x128xf32>
    tpu.vector_store %arg10[%c0_27, %c0_28], %48 {strides = array<i32>} : memref<32x128xf32, #tpu.memory_space<vmem>>, vector<32x128xf32>,
    return
  }
  func.func @transform_0(%arg0: i32) -> (i32, i32) {
    %c0_i32 = arith.constant 0 : i32
    %c0_i32_0 = arith.constant 0 : i32
    return %arg0, %c0_i32 : i32, i32
  }
  func.func @transform_1(%arg0: i32) -> (i32, i32) {
    %c0_i32 = arith.constant 0 : i32
    %c0_i32_0 = arith.constant 0 : i32
    %c0_i32_1 = arith.constant 0 : i32
    return %c0_i32, %c0_i32_0 : i32, i32
  }
  func.func @transform_2(%arg0: i32) -> (i32, i32) {
    %c0_i32 = arith.constant 0 : i32
    %c0_i32_0 = arith.constant 0 : i32
    %c0_i32_1 = arith.constant 0 : i32
    return %c0_i32, %c0_i32_0 : i32, i32
  }
  func.func @transform_3(%arg0: i32) -> (i32, i32) {
    %c0_i32 = arith.constant 0 : i32
    %c0_i32_0 = arith.constant 0 : i32
    %c0_i32_1 = arith.constant 0 : i32
    return %c0_i32, %c0_i32_0 : i32, i32
  }
  func.func @transform_4(%arg0: i32) -> (i32, i32) {
    %c0_i32 = arith.constant 0 : i32
    %c0_i32_0 = arith.constant 0 : i32
    %c0_i32_1 = arith.constant 0 : i32
    return %c0_i32, %c0_i32_0 : i32, i32
  }
  func.func @transform_5(%arg0: i32) -> (i32, i32) {
    %c0_i32 = arith.constant 0 : i32
    %c0_i32_0 = arith.constant 0 : i32
    %c0_i32_1 = arith.constant 0 : i32
    return %c0_i32, %c0_i32_0 : i32, i32
  }
  func.func @transform_6(%arg0: i32) -> (i32, i32) {
    %c0_i32 = arith.constant 0 : i32
    %c0_i32_0 = arith.constant 0 : i32
    %c0_i32_1 = arith.constant 0 : i32
    return %c0_i32, %c0_i32_0 : i32, i32
  }
  func.func @transform_7(%arg0: i32) -> (i32, i32) {
    %c0_i32 = arith.constant 0 : i32
    %c0_i32_0 = arith.constant 0 : i32
    %c0_i32_1 = arith.constant 0 : i32
    return %c0_i32, %c0_i32_0 : i32, i32
  }
  func.func @transform_8(%arg0: i32) -> (i32, i32) {
    %c0_i32 = arith.constant 0 : i32
    %c0_i32_0 = arith.constant 0 : i32
    %c0_i32_1 = arith.constant 0 : i32
    return %c0_i32, %c0_i32_0 : i32, i32
  }
  func.func @transform_9(%arg0: i32) -> (i32, i32) {
    %c0_i32 = arith.constant 0 : i32
    %c0_i32_0 = arith.constant 0 : i32
    return %arg0, %c0_i32 : i32, i32
  }
}

</mosaic_0001>

<llo_original>
// kernel: tpu_custom_call.1
$region0: #{tpu_custom_call.1}
  #allocation0 [shape = 'u32[]', space=smem, size = 0x4, offset = 0x4, fixed_abs, tag = 'smem constant byte address 0x4 - core index']
  #allocation1 [shape = 'u32[144,128]{1,0:T(1,128)}', space=vmem, size = 0x12000, scoped, tag = 'internal scratch']
  %s0 = inlined_call_operand.hbm [shape: f32[64,64], index: 0, kind: input, shape index: {}]
  %s1 = inlined_call_operand.hbm [shape: bf16[64,256], index: 1, kind: input, shape index: {}]
  %s2 = inlined_call_operand.vmem [shape: f32[1,256], index: 2, kind: input, shape index: {}]
  %s3 = inlined_call_operand.hbm [shape: bf16[256,128], index: 3, kind: input, shape index: {}]
  %s4 = inlined_call_operand.vmem [shape: f32[1,128], index: 4, kind: input, shape index: {}]
  %s5 = inlined_call_operand.hbm [shape: bf16[128,128], index: 5, kind: input, shape index: {}]
  %s6 = inlined_call_operand.vmem [shape: f32[1,128], index: 6, kind: input, shape index: {}]
  %s7 = inlined_call_operand.vmem [shape: f32[1,128], index: 7, kind: input, shape index: {}]
  %s8 = inlined_call_operand.vmem [shape: f32[1,128], index: 8, kind: input, shape index: {}]
  %s9 = inlined_call_operand.hbm [shape: f32[64,128], index: 9, kind: output, shape index: {}]
  %s10 = sld [smem:[#allocation0]]
  $region85: #{tpu_custom_call.1} parent=0
    _
  %s12 = ssub.s32 1, %s10
  %s13 = scalar_select 0, %s12, %s10
  $region1: #{tpu_custom_call.1} parent=0
    #allocation2 [shape = 'u8[32768]{0}', space=vmem, size = 0x8000, scoped, tag = 'input window, operand 0']
    #allocation3 [shape = 's32[2]{0}', space=sflag, size = 0x8, scoped, tag = 'scoped memory for tpu_custom_call.1']
    #allocation4 [shape = 's32[2]{0}', space=sflag, size = 0x8, scoped, tag = 'scoped memory for tpu_custom_call.1']
    #allocation5 [shape = 'u8[32768]{0}', space=vmem, size = 0x8000, scoped, tag = 'input window, operand 1, single buffered']
    #allocation6 [shape = 's32[1]{0}', space=sflag, size = 0x4, scoped, tag = 'scoped memory for tpu_custom_call.1']
    #allocation7 [shape = 'u8[65536]{0}', space=vmem, size = 0x10000, scoped, tag = 'input window, operand 3, single buffered']
    #allocation8 [shape = 'u8[32768]{0}', space=vmem, size = 0x8000, scoped, tag = 'input window, operand 5, single buffered']
    #allocation9 [shape = 's32[1]{0}', space=sflag, size = 0x4, scoped, tag = 'scoped memory for tpu_custom_call.1']
    #allocation10 [shape = 'u8[32768]{0}', space=vmem, size = 0x8000, scoped, tag = 'output window, operand 0']
    %14 = vsyncpa [#allocation3], 0
    %s15 = scalar_lea.sflag [#allocation3], 1
    %16 = vsyncpa %s15, 0
    %17 = vsyncpa [#allocation6], 0
    %18 = vsyncpa [#allocation9], 0
    %19 = vsyncpa [#allocation4], 0
    %s20 = scalar_lea.sflag [#allocation4], 1
    %21 = vsyncpa %s20, 0
    loop: start=0, step=1, limit=4
    $region2: #{tpu_custom_call.1} parent=1 // loop_pre_header
      _
    $region3: #{tpu_custom_call.1} parent=1 // loop_header
      %s23 = sphi 0, %s27
      %p24 = scmp.ge.s32.totalorder %s23, 4
      %s33 = sphi 0, %s35
      %s36 = sphi 0, %s33
      %s37 = sphi 0, %s36
      %s53 = sphi 0, %s37
      %s57 = sphi 0, %s57
      %s59 = sphi 0, %s57
      %s60 = sphi 0, %s59
      %s74 = sphi 0, %s60
      %s78 = sphi 0, %s78
      %s80 = sphi 0, %s78
      %s81 = sphi 0, %s80
      %s95 = sphi 0, %s81
      %s99 = sphi 0, %s99
      %s101 = sphi 0, %s99
      %s102 = sphi 0, %s101
      %s116 = sphi 0, %s102
      %s120 = sphi 0, %s120
      %s122 = sphi 0, %s120
      %s123 = sphi 0, %s122
      %s137 = sphi 0, %s123
      %s141 = sphi 0, %s141
      %s143 = sphi 0, %s141
      %s144 = sphi 0, %s143
      %s158 = sphi 0, %s144
      %s162 = sphi 0, %s162
      %s164 = sphi 0, %s162
      %s165 = sphi 0, %s164
      %s179 = sphi 0, %s165
      %s183 = sphi 0, %s183
      %s185 = sphi 0, %s183
      %s186 = sphi 0, %s185
      %s200 = sphi 0, %s186
      %s204 = sphi 0, %s204
      %s206 = sphi 0, %s204
      %s207 = sphi 0, %s206
      %s221 = sphi 0, %s207
      %s227 = sphi 0, %s229
      %s230 = sphi 0, %s227
      %s231 = sphi 0, %s230
      %s247 = sphi 0, %s231
    $region4: #{tpu_custom_call.1} parent=1 // loop_header_branch
      %26 = sbr.rel (%p24) target = $region8
    $region5: #{tpu_custom_call.1} parent=1 // loop_body
      %s28 = ssub.s32 %s23, 1
      %s29 = ssub.s32 %s23, 2
      %s30 = sadd.s32 %s23, 1
      %s31 = ssub.s32 %s23, %s30
      %p32 = scmp.eq.s32.totalorder %s31, 0
      %s34 = sadd.s32 %s33, 1
      %s35 = scalar_select %p32, %s33, %s34
      %p38 = pneg %p32
      %p39 = scmp.eq.s32.totalorder %s23, 1
      %p40 = por %p38, %p39
      %p41 = scmp.ne.s32.totalorder %s33, %s36
      %p42 = scmp.eq.s32.totalorder %s23, 0
      %p43 = por %p41, %p42
      %p44 = scmp.ne.s32.totalorder %s33, %s36
      %p45 = scmp.eq.s32.totalorder %s28, 1
      %p46 = por %p44, %p45
      %p47 = scmp.ne.s32.totalorder %s36, %s37
      %p48 = scmp.eq.s32.totalorder %s28, 0
      %p49 = por %p47, %p48
      %p50 = scmp.ne.s32.totalorder %s36, %s37
      %p51 = scmp.eq.s32.totalorder %s29, 1
      %p52 = por %p50, %p51
      %p54 = scmp.ne.s32.totalorder %s37, %s53
      %p55 = scmp.eq.s32.totalorder %s29, 0
      %p56 = por %p54, %p55
      %s58 = sadd.s32 %s57, 1
      %p61 = scmp.eq.s32.totalorder %s23, 1
      %p62 = scmp.ne.s32.totalorder %s57, %s59
      %p63 = scmp.eq.s32.totalorder %s23, 0
      %p64 = por %p62, %p63
      %p65 = scmp.ne.s32.totalorder %s57, %s59
      %p66 = scmp.eq.s32.totalorder %s28, 1
      %p67 = por %p65, %p66
      %p68 = scmp.ne.s32.totalorder %s59, %s60
      %p69 = scmp.eq.s32.totalorder %s28, 0
      %p70 = por %p68, %p69
      %p71 = scmp.ne.s32.totalorder %s59, %s60
      %p72 = scmp.eq.s32.totalorder %s29, 1
      %p73 = por %p71, %p72
      %p75 = scmp.ne.s32.totalorder %s60, %s74
      %p76 = scmp.eq.s32.totalorder %s29, 0
      %p77 = por %p75, %p76
      %s79 = sadd.s32 %s78, 1
      %p82 = scmp.eq.s32.totalorder %s23, 1
      %p83 = scmp.ne.s32.totalorder %s78, %s80
      %p84 = scmp.eq.s32.totalorder %s23, 0
      %p85 = por %p83, %p84
      %p86 = scmp.ne.s32.totalorder %s78, %s80
      %p87 = scmp.eq.s32.totalorder %s28, 1
      %p88 = por %p86, %p87
      %p89 = scmp.ne.s32.totalorder %s80, %s81
      %p90 = scmp.eq.s32.totalorder %s28, 0
      %p91 = por %p89, %p90
      %p92 = scmp.ne.s32.totalorder %s80, %s81
      %p93 = scmp.eq.s32.totalorder %s29, 1
      %p94 = por %p92, %p93
      %p96 = scmp.ne.s32.totalorder %s81, %s95
      %p97 = scmp.eq.s32.totalorder %s29, 0
      %p98 = por %p96, %p97
      %s100 = sadd.s32 %s99, 1
      %p103 = scmp.eq.s32.totalorder %s23, 1
      %p104 = scmp.ne.s32.totalorder %s99, %s101
      %p105 = scmp.eq.s32.totalorder %s23, 0
      %p106 = por %p104, %p105
      %p107 = scmp.ne.s32.totalorder %s99, %s101
      %p108 = scmp.eq.s32.totalorder %s28, 1
      %p109 = por %p107, %p108
      %p110 = scmp.ne.s32.totalorder %s101, %s102
      %p111 = scmp.eq.s32.totalorder %s28, 0
      %p112 = por %p110, %p111
      %p113 = scmp.ne.s32.totalorder %s101, %s102
      %p114 = scmp.eq.s32.totalorder %s29, 1
      %p115 = por %p113, %p114
      %p117 = scmp.ne.s32.totalorder %s102, %s116
      %p118 = scmp.eq.s32.totalorder %s29, 0
      %p119 = por %p117, %p118
      %s121 = sadd.s32 %s120, 1
      %p124 = scmp.eq.s32.totalorder %s23, 1
      %p125 = scmp.ne.s32.totalorder %s120, %s122
      %p126 = scmp.eq.s32.totalorder %s23, 0
      %p127 = por %p125, %p126
      %p128 = scmp.ne.s32.totalorder %s120, %s122
      %p129 = scmp.eq.s32.totalorder %s28, 1
      %p130 = por %p128, %p129
      %p131 = scmp.ne.s32.totalorder %s122, %s123
      %p132 = scmp.eq.s32.totalorder %s28, 0
      %p133 = por %p131, %p132
      %p134 = scmp.ne.s32.totalorder %s122, %s123
      %p135 = scmp.eq.s32.totalorder %s29, 1
      %p136 = por %p134, %p135
      %p138 = scmp.ne.s32.totalorder %s123, %s137
      %p139 = scmp.eq.s32.totalorder %s29, 0
      %p140 = por %p138, %p139
      %s142 = sadd.s32 %s141, 1
      %p145 = scmp.eq.s32.totalorder %s23, 1
      %p146 = scmp.ne.s32.totalorder %s141, %s143
      %p147 = scmp.eq.s32.totalorder %s23, 0
      %p148 = por %p146, %p147
      %p149 = scmp.ne.s32.totalorder %s141, %s143
      %p150 = scmp.eq.s32.totalorder %s28, 1
      %p151 = por %p149, %p150
      %p152 = scmp.ne.s32.totalorder %s143, %s144
      %p153 = scmp.eq.s32.totalorder %s28, 0
      %p154 = por %p152, %p153
      %p155 = scmp.ne.s32.totalorder %s143, %s144
      %p156 = scmp.eq.s32.totalorder %s29, 1
      %p157 = por %p155, %p156
      %p159 = scmp.ne.s32.totalorder %s144, %s158
      %p160 = scmp.eq.s32.totalorder %s29, 0
      %p161 = por %p159, %p160
      %s163 = sadd.s32 %s162, 1
      %p166 = scmp.eq.s32.totalorder %s23, 1
      %p167 = scmp.ne.s32.totalorder %s162, %s164
      %p168 = scmp.eq.s32.totalorder %s23, 0
      %p169 = por %p167, %p168
      %p170 = scmp.ne.s32.totalorder %s162, %s164
      %p171 = scmp.eq.s32.totalorder %s28, 1
      %p172 = por %p170, %p171
      %p173 = scmp.ne.s32.totalorder %s164, %s165
      %p174 = scmp.eq.s32.totalorder %s28, 0
      %p175 = por %p173, %p174
      %p176 = scmp.ne.s32.totalorder %s164, %s165
      %p177 = scmp.eq.s32.totalorder %s29, 1
      %p178 = por %p176, %p177
      %p180 = scmp.ne.s32.totalorder %s165, %s179
      %p181 = scmp.eq.s32.totalorder %s29, 0
      %p182 = por %p180, %p181
      %s184 = sadd.s32 %s183, 1
      %p187 = scmp.eq.s32.totalorder %s23, 1
      %p188 = scmp.ne.s32.totalorder %s183, %s185
      %p189 = scmp.eq.s32.totalorder %s23, 0
      %p190 = por %p188, %p189
      %p191 = scmp.ne.s32.totalorder %s183, %s185
      %p192 = scmp.eq.s32.totalorder %s28, 1
      %p193 = por %p191, %p192
      %p194 = scmp.ne.s32.totalorder %s185, %s186
      %p195 = scmp.eq.s32.totalorder %s28, 0
      %p196 = por %p194, %p195
      %p197 = scmp.ne.s32.totalorder %s185, %s186
      %p198 = scmp.eq.s32.totalorder %s29, 1
      %p199 = por %p197, %p198
      %p201 = scmp.ne.s32.totalorder %s186, %s200
      %p202 = scmp.eq.s32.totalorder %s29, 0
      %p203 = por %p201, %p202
      %s205 = sadd.s32 %s204, 1
      %p208 = scmp.eq.s32.totalorder %s23, 1
      %p209 = scmp.ne.s32.totalorder %s204, %s206
      %p210 = scmp.eq.s32.totalorder %s23, 0
      %p211 = por %p209, %p210
      %p212 = scmp.ne.s32.totalorder %s204, %s206
      %p213 = scmp.eq.s32.totalorder %s28, 1
      %p214 = por %p212, %p213
      %p215 = scmp.ne.s32.totalorder %s206, %s207
      %p216 = scmp.eq.s32.totalorder %s28, 0
      %p217 = por %p215, %p216
      %p218 = scmp.ne.s32.totalorder %s206, %s207
      %p219 = scmp.eq.s32.totalorder %s29, 1
      %p220 = por %p218, %p219
      %p222 = scmp.ne.s32.totalorder %s207, %s221
      %p223 = scmp.eq.s32.totalorder %s29, 0
      %p224 = por %p222, %p223
      %s225 = ssub.s32 %s23, %s30
      %p226 = scmp.eq.s32.totalorder %s225, 0
      %s228 = sadd.s32 %s227, 1
      %s229 = scalar_select %p226, %s227, %s228
      %p232 = pneg %p226
      %p233 = scmp.eq.s32.totalorder %s23, 1
      %p234 = por %p232, %p233
      %p235 = scmp.ne.s32.totalorder %s227, %s230
      %p236 = scmp.eq.s32.totalorder %s23, 0
      %p237 = por %p235, %p236
      %p238 = scmp.ne.s32.totalorder %s227, %s230
      %p239 = scmp.eq.s32.totalorder %s28, 1
      %p240 = por %p238, %p239
      %p241 = scmp.ne.s32.totalorder %s230, %s231
      %p242 = scmp.eq.s32.totalorder %s28, 0
      %p243 = por %p241, %p242
      %p244 = scmp.ne.s32.totalorder %s230, %s231
      %p245 = scmp.eq.s32.totalorder %s29, 1
      %p246 = por %p244, %p245
      %p248 = scmp.ne.s32.totalorder %s231, %s247
      %p249 = scmp.eq.s32.totalorder %s29, 0
      %p250 = por %p248, %p249
      %p251 = scmp.le.s32.totalorder 1, %s23
      %p252 = scmp.lt.s32.totalorder %s23, 3
      %p253 = pnand %p251, %p252
      %p254 = pneg %p253
      // Predicated region
      $region9: #{tpu_custom_call.1} parent=5 // pred_check
        _
      $region10: #{tpu_custom_call.1} parent=5 // pred_check_branch
        %256 = sbr.rel (%p253) target = $region12
      $region11: #{tpu_custom_call.1} parent=5 // pred_region
        %s257 = ssub.s32 %s23, 1
        // Predicated region
        $region13: #{tpu_custom_call.1} parent=11 // pred_check
          %p258 = pneg %p70
        $region14: #{tpu_custom_call.1} parent=11 // pred_check_branch
          %260 = sbr.rel (%p258) target = $region16
        $region15: #{tpu_custom_call.1} parent=11 // pred_region
          %s262 = ssub.s32 1024, 1024
          %263 = vsyncadd [#allocation6], %s262
          %s264 = sshll.u32 [#allocation5], 4
          %s265 = int_to_ptr.vmem [resolvable:$true] %s264
          %270 = dma.hbm_to_vmem [thread:$0]  %s1, 1024, %s265, [#allocation6], 128, 128, 8
        $region16: #{tpu_custom_call.1} parent=11 // pred_fallthru
          _
        // Predicated region
        $region17: #{tpu_custom_call.1} parent=11 // pred_check
          %p271 = pneg %p91
        $region18: #{tpu_custom_call.1} parent=11 // pred_check_branch
          %273 = sbr.rel (%p271) target = $region20
        $region19: #{tpu_custom_call.1} parent=11 // pred_region
          _
        $region20: #{tpu_custom_call.1} parent=11 // pred_fallthru
          _
        // Predicated region
        $region21: #{tpu_custom_call.1} parent=11 // pred_check
          %p274 = pneg %p112
        $region22: #{tpu_custom_call.1} parent=11 // pred_check_branch
          %276 = sbr.rel (%p274) target = $region24
        $region23: #{tpu_custom_call.1} parent=11 // pred_region
          %s278 = ssub.s32 2048, 2048
          %279 = vsyncadd [#allocation6], %s278
          %s280 = sshll.u32 [#allocation7], 4
          %s281 = int_to_ptr.vmem [resolvable:$true] %s280
          %286 = dma.hbm_to_vmem [thread:$0]  %s3, 2048, %s281, [#allocation6], 64, 64, 4
        $region24: #{tpu_custom_call.1} parent=11 // pred_fallthru
          _
        // Predicated region
        $region25: #{tpu_custom_call.1} parent=11 // pred_check
          %p287 = pneg %p133
        $region26: #{tpu_custom_call.1} parent=11 // pred_check_branch
          %289 = sbr.rel (%p287) target = $region28
        $region27: #{tpu_custom_call.1} parent=11 // pred_region
          _
        $region28: #{tpu_custom_call.1} parent=11 // pred_fallthru
          _
        // Predicated region
        $region29: #{tpu_custom_call.1} parent=11 // pred_check
          %p290 = pneg %p154
        $region30: #{tpu_custom_call.1} parent=11 // pred_check_branch
          %292 = sbr.rel (%p290) target = $region32
        $region31: #{tpu_custom_call.1} parent=11 // pred_region
          %s294 = ssub.s32 1024, 1024
          %295 = vsyncadd [#allocation9], %s294
          %s296 = sshll.u32 [#allocation8], 4
          %s297 = int_to_ptr.vmem [resolvable:$true] %s296
          %302 = dma.hbm_to_vmem [thread:$0]  %s5, 1024, %s297, [#allocation9], 64, 64, 4
        $region32: #{tpu_custom_call.1} parent=11 // pred_fallthru
          _
        // Predicated region
        $region33: #{tpu_custom_call.1} parent=11 // pred_check
          %p303 = pneg %p175
        $region34: #{tpu_custom_call.1} parent=11 // pred_check_branch
          %305 = sbr.rel (%p303) target = $region36
        $region35: #{tpu_custom_call.1} parent=11 // pred_region
          _
        $region36: #{tpu_custom_call.1} parent=11 // pred_fallthru
          _
        // Predicated region
        $region37: #{tpu_custom_call.1} parent=11 // pred_check
          %p306 = pneg %p196
        $region38: #{tpu_custom_call.1} parent=11 // pred_check_branch
          %308 = sbr.rel (%p306) target = $region40
        $region39: #{tpu_custom_call.1} parent=11 // pred_region
          _
        $region40: #{tpu_custom_call.1} parent=11 // pred_fallthru
          _
        // Predicated region
        $region41: #{tpu_custom_call.1} parent=11 // pred_check
          %p309 = pneg %p217
        $region42: #{tpu_custom_call.1} parent=11 // pred_check_branch
          %311 = sbr.rel (%p309) target = $region44
        $region43: #{tpu_custom_call.1} parent=11 // pred_region
          _
        $region44: #{tpu_custom_call.1} parent=11 // pred_fallthru
          _
      $region12: #{tpu_custom_call.1} parent=5 // pred_fallthru
        _
      %p312 = scmp.lt.s32.totalorder %s23, 2
      // Predicated region
      $region45: #{tpu_custom_call.1} parent=5 // pred_check
        %p313 = pneg %p312
      $region46: #{tpu_custom_call.1} parent=5 // pred_check_branch
        %315 = sbr.rel (%p313) target = $region48
      $region47: #{tpu_custom_call.1} parent=5 // pred_region
        // Predicated region
        $region49: #{tpu_custom_call.1} parent=47 // pred_check
          %p316 = pneg %p43
        $region50: #{tpu_custom_call.1} parent=47 // pred_check_branch
          %318 = sbr.rel (%p316) target = $region52
        $region51: #{tpu_custom_call.1} parent=47 // pred_region
          %s319 = sand.u32 %s33, 1
          %s320 = scalar_lea.sflag [#allocation3], %s319
          %s321 = sand.u32 %s33, 1
          %s322 = smul.addr %s321, 32
          %s323 = scalar_lea.vmem [#allocation2], %s322
          %s324 = smul.u32 4, %s23
          %s326 = ssub.s32 512, 512
          %327 = vsyncadd %s320, %s326
          %s328 = smul.addr %s324, 128
          %s329 = scalar_lea.hbm %s0, %s328
          %s330 = sshll.u32 %s323, 4
          %s331 = int_to_ptr.vmem [resolvable:$true] %s330
          %336 = dma.hbm_to_vmem [thread:$0]  %s329, 512, %s331, %s320, 128, 128, 8
        $region52: #{tpu_custom_call.1} parent=47 // pred_fallthru
          _
      $region48: #{tpu_custom_call.1} parent=5 // pred_fallthru
        _
      %p337 = scmp.le.s32.totalorder 1, %s23
      %p338 = scmp.lt.s32.totalorder %s23, 3
      %p339 = pnand %p337, %p338
      %p340 = pneg %p339
      // Predicated region
      $region53: #{tpu_custom_call.1} parent=5 // pred_check
        _
      $region54: #{tpu_custom_call.1} parent=5 // pred_check_branch
        %342 = sbr.rel (%p339) target = $region56
      $region55: #{tpu_custom_call.1} parent=5 // pred_region
        %s343 = ssub.s32 %s23, 1
        %s344 = sand.u32 %s36, 1
        %s345 = scalar_lea.sflag [#allocation3], %s344
        %s346 = sand.u32 %s36, 1
        %s347 = smul.addr %s346, 32
        %s348 = scalar_lea.vmem [#allocation2], %s347
        // Predicated region
        $region57: #{tpu_custom_call.1} parent=55 // pred_check
          %p349 = pneg %p49
        $region58: #{tpu_custom_call.1} parent=55 // pred_check_branch
          %351 = sbr.rel (%p349) target = $region60
        $region59: #{tpu_custom_call.1} parent=55 // pred_region
          %352 = dma.done %s345, 512
        $region60: #{tpu_custom_call.1} parent=55 // pred_fallthru
          _
        // Predicated region
        $region61: #{tpu_custom_call.1} parent=55 // pred_check
          %p353 = pneg %p70
        $region62: #{tpu_custom_call.1} parent=55 // pred_check_branch
          %355 = sbr.rel (%p353) target = $region64
        $region63: #{tpu_custom_call.1} parent=55 // pred_region
          %356 = dma.done [#allocation6], 1024
        $region64: #{tpu_custom_call.1} parent=55 // pred_fallthru
          _
        // Predicated region
        $region65: #{tpu_custom_call.1} parent=55 // pred_check
          %p357 = pneg %p112
        $region66: #{tpu_custom_call.1} parent=55 // pred_check_branch
          %359 = sbr.rel (%p357) target = $region68
        $region67: #{tpu_custom_call.1} parent=55 // pred_region
          %360 = dma.done [#allocation6], 2048
        $region68: #{tpu_custom_call.1} parent=55 // pred_fallthru
          _
        // Predicated region
        $region69: #{tpu_custom_call.1} parent=55 // pred_check
          %p361 = pneg %p154
        $region70: #{tpu_custom_call.1} parent=55 // pred_check_branch
          %363 = sbr.rel (%p361) target = $region72
        $region71: #{tpu_custom_call.1} parent=55 // pred_region
          %364 = dma.done [#allocation9], 1024
        $region72: #{tpu_custom_call.1} parent=55 // pred_fallthru
          _
        %s365 = sand.u32 %s36, 1
        %s366 = scalar_lea.sflag [#allocation3], %s365
        %s367 = sand.u32 %s36, 1
        %s368 = smul.addr %s367, 32
        %s369 = scalar_lea.vmem [#allocation2], %s368
        %p370 = pneg %p49
        %p371 = pneg %p46
        %p372 = pneg %p70
        %p373 = pneg %p67
        %p374 = pneg %p91
        %p375 = pneg %p88
        %p376 = pneg %p112
        %p377 = pneg %p109
        %p378 = pneg %p133
        %p379 = pneg %p130
        %p380 = pneg %p154
        %p381 = pneg %p151
        %p382 = pneg %p175
        %p383 = pneg %p172
        %p384 = pneg %p196
        %p385 = pneg %p193
        %p386 = pneg %p217
        %p387 = pneg %p214
        %p388 = pneg %p243
        %p389 = pneg %p240
        %s390 = sand.u32 %s230, 1
        %s391 = scalar_lea.sflag [#allocation4], %s390
        %s392 = sand.u32 %s230, 1
        %s393 = smul.addr %s392, 32
        %s394 = scalar_lea.vmem [#allocation10], %s393
        %s395 = smul.u32 4, %s28
        %s396 = smul.u32 4, %s28
        %v398 = vld [vmem:[%s348] sm:$0xff]
        %v399 = vld [vmem:[%s348 + $0x8] sm:$0xff]
        %v400 = vld [vmem:[%s348 + $0x10] sm:$0xff]
        %v401 = vld [vmem:[%s348 + $0x18] sm:$0xff]
        %v402 = vpack.c.bf16 %v399, %v398
        %v403 = vpack.c.bf16 %v401, %v400
        %v404 = vld [vmem:[#allocation5] sm:$0xff]
        %v405 = vld [vmem:[#allocation5 + $0x8] sm:$0xff]
        %v406 = vld [vmem:[#allocation5 + $0x10] sm:$0xff]
        %v407 = vld [vmem:[#allocation5 + $0x18] sm:$0xff]
        %v408 = vld [vmem:[#allocation5 + $0x20] sm:$0xff]
        %v409 = vld [vmem:[#allocation5 + $0x28] sm:$0xff]
        %v410 = vld [vmem:[#allocation5 + $0x30] sm:$0xff]
        %v411 = vld [vmem:[#allocation5 + $0x38] sm:$0xff]
        %v412 = vld [vmem:[%s2] sm:$0x3]
        %v414 = vlaneseq
        %v415 = vshrl.u32 %v414, 7
        %v416 = vsub.s32 0, %v415
        %v417 = vrot.slane %v412, %v416
        %v418 = vlaneseq
        %v419 = vshrl.u32 %v418, 7
        %v420 = vsub.s32 1, %v419
        %v421 = vrot.slane %v412, %v420
        %v432 = vunpack.c.l.b16 %v404
        %v433 = vunpack.c.h.b16 %v404
        %v434 = vunpack.c.l.b16 %v405
        %v435 = vunpack.c.h.b16 %v405
        %v436 = vunpack.c.l.b16 %v406
        %v437 = vunpack.c.h.b16 %v406
        %v438 = vunpack.c.l.b16 %v407
        %v439 = vunpack.c.h.b16 %v407
        %v440 = vunpack.c.l.b16 %v408
        %v441 = vunpack.c.h.b16 %v408
        %v442 = vunpack.c.l.b16 %v409
        %v443 = vunpack.c.h.b16 %v409
        %v444 = vunpack.c.l.b16 %v410
        %v445 = vunpack.c.h.b16 %v410
        %v446 = vunpack.c.l.b16 %v411
        %v447 = vunpack.c.h.b16 %v411
        %v448 = vpack.c.b16 %v434, %v432
        %v449 = vpack.c.b16 %v435, %v433
        %v450 = vpack.c.b16 %v438, %v436
        %v451 = vpack.c.b16 %v439, %v437
        %v452 = vpack.c.b16 %v442, %v440
        %v453 = vpack.c.b16 %v443, %v441
        %v454 = vpack.c.b16 %v446, %v444
        %v455 = vpack.c.b16 %v447, %v445
        %vm464 = vcmask 523264
        %v466 = vsel %vm464, %v402, 0
        %v469 = vsel %vm464, %v403, 0
        %471 = vmatprep.subr.bf16.mxu0 0
        %472 = vmatpush1.bf16.msra.mxu0 0
        %473 = vmatprep.subr.bf16.mxu0 0
        %474 = vmatpush1.bf16.msra.mxu0 0
        %475 = vmatprep.subr.bf16.mxu0 0
        %476 = vmatpush1.bf16.msra.mxu0 0
        %477 = vmatprep.subr.bf16.mxu0 0
        %478 = vmatpush1.bf16.msra.mxu0 0
        %479 = vmatprep.subr.bf16.mxu0 %v455
        %480 = vmatpush1.bf16.msra.mxu0 %v454
        %481 = vmatprep.subr.bf16.mxu0 %v453
        %482 = vmatpush1.bf16.msra.mxu0 %v452
        %483 = vmatprep.subr.bf16.mxu0 %v451
        %484 = vmatpush1.bf16.msra.mxu0 %v450
        %485 = vmatprep.subr.bf16.mxu0 %v449
        %486 = vmatpush1.bf16.msra.mxu0 %v448
        %487 = vmatprep.subr.bf16.mxu0 0
        %488 = vmatpush2.bf16.msra.mxu0 0
        %489 = vmatprep.subr.bf16.mxu0 0
        %490 = vmatpush2.bf16.msra.mxu0 0
        %491 = vmatprep.subr.bf16.mxu0 0
        %492 = vmatpush2.bf16.msra.mxu0 0
        %493 = vmatprep.subr.bf16.mxu0 0
        %494 = vmatpush2.bf16.msra.mxu0 0
        %495 = vmatprep.subr.bf16.mxu0 0
        %496 = vmatpush2.bf16.msra.mxu0 0
        %497 = vmatprep.subr.bf16.mxu0 0
        %498 = vmatpush2.bf16.msra.mxu0 0
        %499 = vmatprep.subr.bf16.mxu0 0
        %500 = vmatpush2.bf16.msra.mxu0 0
        %501 = vmatprep.subr.bf16.mxu0 0
        %502 = vmatpush2.bf16.msra.mxu0 0
        %503 = vmatprep.mubr.bf16.mxu0 0
        %504 = vmatmul.mubr.bf16.gmra.mxu0 %v466
        %v505 = vpop.f32.mrf.mxu0
        %v506 = vadd.f32 %v417, %v505
        %v507 = vpop.f32.mrf.mxu0
        %v508 = vadd.f32 %v421, %v507
        %v509 = vpop.f32.mrf.mxu0
        %v510 = vadd.f32 %v417, %v509
        %v511 = vpop.f32.mrf.mxu0
        %v512 = vadd.f32 %v421, %v511
        %513 = vmatprep.mubr.bf16.mxu0 0
        %514 = vmatmul.mubr.bf16.gmra.mxu0 %v469
        %v515 = vpop.f32.mrf.mxu0
        %v516 = vadd.f32 %v417, %v515
        %v517 = vpop.f32.mrf.mxu0
        %v518 = vadd.f32 %v421, %v517
        %v519 = vpop.f32.mrf.mxu0
        %v520 = vadd.f32 %v417, %v519
        %v521 = vpop.f32.mrf.mxu0
        %v522 = vadd.f32 %v421, %v521
        %523 = vdwg.mxu0
        %v524 = vmax.f32 %v506, 0.0
        %v525 = vmax.f32 %v508, 0.0
        %v526 = vmax.f32 %v510, 0.0
        %v527 = vmax.f32 %v512, 0.0
        %v528 = vmax.f32 %v516, 0.0
        %v529 = vmax.f32 %v518, 0.0
        %v530 = vmax.f32 %v520, 0.0
        %v531 = vmax.f32 %v522, 0.0
        %v532 = vpack.c.bf16 %v526, %v524
        %v533 = vpack.c.bf16 %v527, %v525
        %v534 = vpack.c.bf16 %v530, %v528
        %v535 = vpack.c.bf16 %v531, %v529
        %v536 = vld [vmem:[#allocation7] sm:$0xf]
        %v537 = vld [vmem:[#allocation7 + $0x4] sm:$0xf]
        %v538 = vld [vmem:[#allocation7 + $0x8] sm:$0xf]
        %v539 = vld [vmem:[#allocation7 + $0xc] sm:$0xf]
        %v540 = vld [vmem:[#allocation7 + $0x10] sm:$0xf]
        %v541 = vld [vmem:[#allocation7 + $0x14] sm:$0xf]
        %v542 = vld [vmem:[#allocation7 + $0x18] sm:$0xf]
        %v543 = vld [vmem:[#allocation7 + $0x1c] sm:$0xf]
        %v544 = vld [vmem:[#allocation7 + $0x20] sm:$0xf]
        %v545 = vld [vmem:[#allocation7 + $0x24] sm:$0xf]
        %v546 = vld [vmem:[#allocation7 + $0x28] sm:$0xf]
        %v547 = vld [vmem:[#allocation7 + $0x2c] sm:$0xf]
        %v548 = vld [vmem:[#allocation7 + $0x30] sm:$0xf]
        %v549 = vld [vmem:[#allocation7 + $0x34] sm:$0xf]
        %v550 = vld [vmem:[#allocation7 + $0x38] sm:$0xf]
        %v551 = vld [vmem:[#allocation7 + $0x3c] sm:$0xf]
        %v552 = vld [vmem:[#allocation7 + $0x40] sm:$0xf]
        %v553 = vld [vmem:[#allocation7 + $0x44] sm:$0xf]
        %v554 = vld [vmem:[#allocation7 + $0x48] sm:$0xf]
        %v555 = vld [vmem:[#allocation7 + $0x4c] sm:$0xf]
        %v556 = vld [vmem:[#allocation7 + $0x50] sm:$0xf]
        %v557 = vld [vmem:[#allocation7 + $0x54] sm:$0xf]
        %v558 = vld [vmem:[#allocation7 + $0x58] sm:$0xf]
        %v559 = vld [vmem:[#allocation7 + $0x5c] sm:$0xf]
        %v560 = vld [vmem:[#allocation7 + $0x60] sm:$0xf]
        %v561 = vld [vmem:[#allocation7 + $0x64] sm:$0xf]
        %v562 = vld [vmem:[#allocation7 + $0x68] sm:$0xf]
        %v563 = vld [vmem:[#allocation7 + $0x6c] sm:$0xf]
        %v564 = vld [vmem:[#allocation7 + $0x70] sm:$0xf]
        %v565 = vld [vmem:[#allocation7 + $0x74] sm:$0xf]
        %v566 = vld [vmem:[#allocation7 + $0x78] sm:$0xf]
        %v567 = vld [vmem:[#allocation7 + $0x7c] sm:$0xf]
        %v568 = vld [vmem:[%s4] sm:$0x1]
        %v570 = vlaneseq
        %v571 = vshrl.u32 %v570, 7
        %v572 = vsub.s32 0, %v571
        %v573 = vrot.slane %v568, %v572
        %v607 = vunpack.c.l.b16 %v536
        %v608 = vunpack.c.l.b16 %v537
        %v609 = vunpack.c.l.b16 %v538
        %v610 = vunpack.c.l.b16 %v539
        %v611 = vunpack.c.l.b16 %v540
        %v612 = vunpack.c.l.b16 %v541
        %v613 = vunpack.c.l.b16 %v542
        %v614 = vunpack.c.l.b16 %v543
        %v615 = vunpack.c.l.b16 %v544
        %v616 = vunpack.c.l.b16 %v545
        %v617 = vunpack.c.l.b16 %v546
        %v618 = vunpack.c.l.b16 %v547
        %v619 = vunpack.c.l.b16 %v548
        %v620 = vunpack.c.l.b16 %v549
        %v621 = vunpack.c.l.b16 %v550
        %v622 = vunpack.c.l.b16 %v551
        %v623 = vunpack.c.l.b16 %v552
        %v624 = vunpack.c.l.b16 %v553
        %v625 = vunpack.c.l.b16 %v554
        %v626 = vunpack.c.l.b16 %v555
        %v627 = vunpack.c.l.b16 %v556
        %v628 = vunpack.c.l.b16 %v557
        %v629 = vunpack.c.l.b16 %v558
        %v630 = vunpack.c.l.b16 %v559
        %v631 = vunpack.c.l.b16 %v560
        %v632 = vunpack.c.l.b16 %v561
        %v633 = vunpack.c.l.b16 %v562
        %v634 = vunpack.c.l.b16 %v563
        %v635 = vunpack.c.l.b16 %v564
        %v636 = vunpack.c.l.b16 %v565
        %v637 = vunpack.c.l.b16 %v566
        %v638 = vunpack.c.l.b16 %v567
        %v639 = vpack.c.b16 %v608, %v607
        %v640 = vpack.c.b16 %v610, %v609
        %v641 = vpack.c.b16 %v612, %v611
        %v642 = vpack.c.b16 %v614, %v613
        %v643 = vpack.c.b16 %v616, %v615
        %v644 = vpack.c.b16 %v618, %v617
        %v645 = vpack.c.b16 %v620, %v619
        %v646 = vpack.c.b16 %v622, %v621
        %v647 = vpack.c.b16 %v624, %v623
        %v648 = vpack.c.b16 %v626, %v625
        %v649 = vpack.c.b16 %v628, %v627
        %v650 = vpack.c.b16 %v630, %v629
        %v651 = vpack.c.b16 %v632, %v631
        %v652 = vpack.c.b16 %v634, %v633
        %v653 = vpack.c.b16 %v636, %v635
        %v654 = vpack.c.b16 %v638, %v637
        %671 = vmatprep.subr.bf16.mxu0 0
        %672 = vmatpush1.bf16.msra.mxu0 %v646
        %673 = vmatprep.subr.bf16.mxu0 0
        %674 = vmatpush1.bf16.msra.mxu0 %v645
        %675 = vmatprep.subr.bf16.mxu0 0
        %676 = vmatpush1.bf16.msra.mxu0 %v644
        %677 = vmatprep.subr.bf16.mxu0 0
        %678 = vmatpush1.bf16.msra.mxu0 %v643
        %679 = vmatprep.subr.bf16.mxu0 0
        %680 = vmatpush1.bf16.msra.mxu0 %v642
        %681 = vmatprep.subr.bf16.mxu0 0
        %682 = vmatpush1.bf16.msra.mxu0 %v641
        %683 = vmatprep.subr.bf16.mxu0 0
        %684 = vmatpush1.bf16.msra.mxu0 %v640
        %685 = vmatprep.subr.bf16.mxu0 0
        %686 = vmatpush1.bf16.msra.mxu0 %v639
        %687 = vmatprep.subr.bf16.mxu0 0
        %688 = vmatpush2.bf16.msra.mxu0 %v654
        %689 = vmatprep.subr.bf16.mxu0 0
        %690 = vmatpush2.bf16.msra.mxu0 %v653
        %691 = vmatprep.subr.bf16.mxu0 0
        %692 = vmatpush2.bf16.msra.mxu0 %v652
        %693 = vmatprep.subr.bf16.mxu0 0
        %694 = vmatpush2.bf16.msra.mxu0 %v651
        %695 = vmatprep.subr.bf16.mxu0 0
        %696 = vmatpush2.bf16.msra.mxu0 %v650
        %697 = vmatprep.subr.bf16.mxu0 0
        %698 = vmatpush2.bf16.msra.mxu0 %v649
        %699 = vmatprep.subr.bf16.mxu0 0
        %700 = vmatpush2.bf16.msra.mxu0 %v648
        %701 = vmatprep.subr.bf16.mxu0 0
        %702 = vmatpush2.bf16.msra.mxu0 %v647
        %703 = vmatprep.mubr.bf16.mxu0 %v533
        %704 = vmatmul.mubr.bf16.gmra.mxu0 %v532
        %v705 = vpop.f32.mrf.mxu0
        %v706 = vadd.f32 %v573, %v705
        %v707 = vpop.f32.mrf.mxu0
        %v708 = vpop.f32.mrf.mxu0
        %v709 = vadd.f32 %v573, %v708
        %v710 = vpop.f32.mrf.mxu0
        %711 = vmatprep.mubr.bf16.mxu0 %v535
        %712 = vmatmul.mubr.bf16.gmra.mxu0 %v534
        %v713 = vpop.f32.mrf.mxu0
        %v714 = vadd.f32 %v573, %v713
        %v715 = vpop.f32.mrf.mxu0
        %v716 = vpop.f32.mrf.mxu0
        %v717 = vadd.f32 %v573, %v716
        %v718 = vpop.f32.mrf.mxu0
        %719 = vdwg.mxu0
        %v720 = vmax.f32 %v706, 0.0
        %v721 = vmax.f32 %v709, 0.0
        %v722 = vmax.f32 %v714, 0.0
        %v723 = vmax.f32 %v717, 0.0
        %v724 = vpack.c.bf16 %v721, %v720
        %v725 = vpack.c.bf16 %v723, %v722
        %v726 = vld [vmem:[#allocation8] sm:$0xf]
        %v727 = vld [vmem:[#allocation8 + $0x4] sm:$0xf]
        %v728 = vld [vmem:[#allocation8 + $0x8] sm:$0xf]
        %v729 = vld [vmem:[#allocation8 + $0xc] sm:$0xf]
        %v730 = vld [vmem:[#allocation8 + $0x10] sm:$0xf]
        %v731 = vld [vmem:[#allocation8 + $0x14] sm:$0xf]
        %v732 = vld [vmem:[#allocation8 + $0x18] sm:$0xf]
        %v733 = vld [vmem:[#allocation8 + $0x1c] sm:$0xf]
        %v734 = vld [vmem:[#allocation8 + $0x20] sm:$0xf]
        %v735 = vld [vmem:[#allocation8 + $0x24] sm:$0xf]
        %v736 = vld [vmem:[#allocation8 + $0x28] sm:$0xf]
        %v737 = vld [vmem:[#allocation8 + $0x2c] sm:$0xf]
        %v738 = vld [vmem:[#allocation8 + $0x30] sm:$0xf]
        %v739 = vld [vmem:[#allocation8 + $0x34] sm:$0xf]
        %v740 = vld [vmem:[#allocation8 + $0x38] sm:$0xf]
        %v741 = vld [vmem:[#allocation8 + $0x3c] sm:$0xf]
        %v742 = vld [vmem:[%s6] sm:$0x1]
        %v744 = vlaneseq
        %v745 = vshrl.u32 %v744, 7
        %v746 = vsub.s32 0, %v745
        %v747 = vrot.slane %v742, %v746
        %v765 = vunpack.c.l.b16 %v726
        %v766 = vunpack.c.l.b16 %v727
        %v767 = vunpack.c.l.b16 %v728
        %v768 = vunpack.c.l.b16 %v729
        %v769 = vunpack.c.l.b16 %v730
        %v770 = vunpack.c.l.b16 %v731
        %v771 = vunpack.c.l.b16 %v732
        %v772 = vunpack.c.l.b16 %v733
        %v773 = vunpack.c.l.b16 %v734
        %v774 = vunpack.c.l.b16 %v735
        %v775 = vunpack.c.l.b16 %v736
        %v776 = vunpack.c.l.b16 %v737
        %v777 = vunpack.c.l.b16 %v738
        %v778 = vunpack.c.l.b16 %v739
        %v779 = vunpack.c.l.b16 %v740
        %v780 = vunpack.c.l.b16 %v741
        %v781 = vpack.c.b16 %v766, %v765
        %v782 = vpack.c.b16 %v768, %v767
        %v783 = vpack.c.b16 %v770, %v769
        %v784 = vpack.c.b16 %v772, %v771
        %v785 = vpack.c.b16 %v774, %v773
        %v786 = vpack.c.b16 %v776, %v775
        %v787 = vpack.c.b16 %v778, %v777
        %v788 = vpack.c.b16 %v780, %v779
        %797 = vmatprep.subr.bf16.mxu0 0
        %798 = vmatpush1.bf16.msra.mxu0 %v788
        %799 = vmatprep.subr.bf16.mxu0 0
        %800 = vmatpush1.bf16.msra.mxu0 %v787
        %801 = vmatprep.subr.bf16.mxu0 0
        %802 = vmatpush1.bf16.msra.mxu0 %v786
        %803 = vmatprep.subr.bf16.mxu0 0
        %804 = vmatpush1.bf16.msra.mxu0 %v785
        %805 = vmatprep.subr.bf16.mxu0 0
        %806 = vmatpush1.bf16.msra.mxu0 %v784
        %807 = vmatprep.subr.bf16.mxu0 0
        %808 = vmatpush1.bf16.msra.mxu0 %v783
        %809 = vmatprep.subr.bf16.mxu0 0
        %810 = vmatpush1.bf16.msra.mxu0 %v782
        %811 = vmatprep.subr.bf16.mxu0 0
        %812 = vmatpush1.bf16.msra.mxu0 %v781
        %813 = vmatprep.subr.bf16.mxu0 0
        %814 = vmatpush2.bf16.msra.mxu0 0
        %815 = vmatprep.subr.bf16.mxu0 0
        %816 = vmatpush2.bf16.msra.mxu0 0
        %817 = vmatprep.subr.bf16.mxu0 0
        %818 = vmatpush2.bf16.msra.mxu0 0
        %819 = vmatprep.subr.bf16.mxu0 0
        %820 = vmatpush2.bf16.msra.mxu0 0
        %821 = vmatprep.subr.bf16.mxu0 0
        %822 = vmatpush2.bf16.msra.mxu0 0
        %823 = vmatprep.subr.bf16.mxu0 0
        %824 = vmatpush2.bf16.msra.mxu0 0
        %825 = vmatprep.subr.bf16.mxu0 0
        %826 = vmatpush2.bf16.msra.mxu0 0
        %827 = vmatprep.subr.bf16.mxu0 0
        %828 = vmatpush2.bf16.msra.mxu0 0
        %829 = vmatprep.mubr.bf16.mxu0 0
        %830 = vmatmul.mubr.bf16.gmra.mxu0 %v724
        %v831 = vpop.f32.mrf.mxu0
        %v832 = vadd.f32 %v747, %v831
        %v833 = vpop.f32.mrf.mxu0
        %v834 = vpop.f32.mrf.mxu0
        %v835 = vadd.f32 %v747, %v834
        %v836 = vpop.f32.mrf.mxu0
        %837 = vmatprep.mubr.bf16.mxu0 0
        %838 = vmatmul.mubr.bf16.gmra.mxu0 %v725
        %v839 = vpop.f32.mrf.mxu0
        %v840 = vadd.f32 %v747, %v839
        %v841 = vpop.f32.mrf.mxu0
        %v842 = vpop.f32.mrf.mxu0
        %v843 = vadd.f32 %v747, %v842
        %v844 = vpop.f32.mrf.mxu0
        %845 = vdwg.mxu0
        %v846 = vmax.f32 %v832, 0.0
        %v847 = vmax.f32 %v835, 0.0
        %v848 = vmax.f32 %v840, 0.0
        %v849 = vmax.f32 %v843, 0.0
        %v850 = vld [vmem:[%s7] sm:$0x1]
        %v852 = vlaneseq
        %v853 = vshrl.u32 %v852, 7
        %v854 = vsub.s32 0, %v853
        %v855 = vrot.slane %v850, %v854
        %v857 = vadd.f32 %v846, %v855
        %v858 = vadd.f32 %v847, %v855
        %v859 = vadd.f32 %v848, %v855
        %v860 = vadd.f32 %v849, %v855
        %861 = vmax.xlane.f32.xlu0 %v857
        %v862 = vpop.xlane.xlu0 %861
        %863 = vmax.xlane.f32.xlu0 %v858
        %v864 = vpop.xlane.xlu0 %863
        %865 = vmax.xlane.f32.xlu0 %v859
        %v866 = vpop.xlane.xlu0 %865
        %867 = vmax.xlane.f32.xlu0 %v860
        %v868 = vpop.xlane.xlu0 %867
        %v869 = vsub.f32 %v857, %v862
        %v870 = vsub.f32 %v858, %v864
        %v871 = vsub.f32 %v859, %v866
        %v872 = vsub.f32 %v860, %v868
        %v873 = vmul.f32 %v869, 1.442695
        %v874 = vpow.pop %v873
        %v875 = vmul.f32 %v870, 1.442695
        %v876 = vpow.pop %v875
        %v877 = vmul.f32 %v871, 1.442695
        %v878 = vpow.pop %v877
        %v879 = vmul.f32 %v872, 1.442695
        %v880 = vpow.pop %v879
        %881 = vadd.xlane.f32.xlu0 %v874
        %v882 = vpop.xlane.xlu0 %881
        %883 = vadd.xlane.f32.xlu0 %v876
        %v884 = vpop.xlane.xlu0 %883
        %885 = vadd.xlane.f32.xlu0 %v878
        %v886 = vpop.xlane.xlu0 %885
        %887 = vadd.xlane.f32.xlu0 %v880
        %v888 = vpop.xlane.xlu0 %887
        %v889 = vrcp.pop %v882
        %v890 = vrcp.pop %v884
        %v891 = vrcp.pop %v886
        %v892 = vrcp.pop %v888
        %v893 = vmul.f32 %v874, %v889
        %v894 = vmul.f32 %v876, %v890
        %v895 = vmul.f32 %v878, %v891
        %v896 = vmul.f32 %v880, %v892
        %v897 = vld [vmem:[%s8] sm:$0x1]
        %v899 = vlaneseq
        %v900 = vshrl.u32 %v899, 7
        %v901 = vsub.s32 0, %v900
        %v902 = vrot.slane %v897, %v901
        %v904 = vmul.f32 %v832, %v902
        %v905 = vmul.f32 %v835, %v902
        %v906 = vmul.f32 %v840, %v902
        %v907 = vmul.f32 %v843, %v902
        %908 = vadd.xlane.f32.xlu0 %v904
        %v909 = vpop.xlane.xlu0 %908
        %910 = vadd.xlane.f32.xlu0 %v905
        %v911 = vpop.xlane.xlu0 %910
        %912 = vadd.xlane.f32.xlu0 %v906
        %v913 = vpop.xlane.xlu0 %912
        %914 = vadd.xlane.f32.xlu0 %v907
        %v915 = vpop.xlane.xlu0 %914
        %v916 = vtanh.pop %v909
        %v917 = vtanh.pop %v911
        %v918 = vtanh.pop %v913
        %v919 = vtanh.pop %v915
        %v920 = vmul.f32 %v916, %v902
        %v921 = vmul.f32 %v917, %v902
        %v922 = vmul.f32 %v918, %v902
        %v923 = vmul.f32 %v919, %v902
        %v924 = vadd.f32 %v893, %v920
        %v925 = vadd.f32 %v894, %v921
        %v926 = vadd.f32 %v895, %v922
        %v927 = vadd.f32 %v896, %v923
        %928 = vst [vmem:[%s394] sm:$0xff] %v924
        %929 = vst [vmem:[%s394 + $0x8] sm:$0xff] %v925
        %930 = vst [vmem:[%s394 + $0x10] sm:$0xff] %v926
        %931 = vst [vmem:[%s394 + $0x18] sm:$0xff] %v927
        %s932 = sand.u32 %s230, 1
        %s933 = scalar_lea.sflag [#allocation4], %s932
        %s934 = sand.u32 %s230, 1
        %s935 = smul.addr %s934, 32
        %s936 = scalar_lea.vmem [#allocation10], %s935
        // Predicated region
        $region73: #{tpu_custom_call.1} parent=55 // pred_check
          %p937 = pneg %p240
        $region74: #{tpu_custom_call.1} parent=55 // pred_check_branch
          %939 = sbr.rel (%p937) target = $region76
        $region75: #{tpu_custom_call.1} parent=55 // pred_region
          %s940 = smul.u32 4, %s28
          %s942 = ssub.s32 512, 512
          %943 = vsyncadd %s933, %s942
          %s944 = smul.addr %s940, 128
          %s945 = scalar_lea.hbm %s9, %s944
          %s946 = sshll.u32 %s936, 4
          %s947 = int_to_ptr.vmem [resolvable:$true] %s946
          %952 = dma.vmem_to_hbm [thread:$0]  %s947, 512, %s945, %s933, 128, 128, 8
        $region76: #{tpu_custom_call.1} parent=55 // pred_fallthru
          _
      $region56: #{tpu_custom_call.1} parent=5 // pred_fallthru
        _
      %p953 = scmp.le.s32.totalorder 2, %s23
      // Predicated region
      $region77: #{tpu_custom_call.1} parent=5 // pred_check
        %p954 = pneg %p953
      $region78: #{tpu_custom_call.1} parent=5 // pred_check_branch
        %956 = sbr.rel (%p954) target = $region80
      $region79: #{tpu_custom_call.1} parent=5 // pred_region
        %s957 = ssub.s32 %s23, 2
        // Predicated region
        $region81: #{tpu_custom_call.1} parent=79 // pred_check
          %p958 = pneg %p246
        $region82: #{tpu_custom_call.1} parent=79 // pred_check_branch
          %960 = sbr.rel (%p958) target = $region84
        $region83: #{tpu_custom_call.1} parent=79 // pred_region
          %s961 = sand.u32 %s231, 1
          %s962 = scalar_lea.sflag [#allocation4], %s961
          %s963 = sand.u32 %s231, 1
          %s964 = smul.addr %s963, 32
          %s965 = scalar_lea.vmem [#allocation10], %s964
          %966 = dma.done %s962, 512
        $region84: #{tpu_custom_call.1} parent=79 // pred_fallthru
          _
      $region80: #{tpu_custom_call.1} parent=5 // pred_fallthru
        _
    $region6: #{tpu_custom_call.1} parent=1 // loop_footer
      %s27 = sadd.s32 1, %s23
    $region7: #{tpu_custom_call.1} parent=1 // loop_footer_branch
      %22 = sbr.rel target = $region3
    $region8: #{tpu_custom_call.1} parent=1 // loop_exit
      _
    %967 = vsyncpa [#allocation3], 1
    %s968 = scalar_lea.sflag [#allocation3], 1
    %969 = vsyncpa %s968, 1
    %970 = vsyncpa [#allocation6], 1
    %971 = vsyncpa [#allocation9], 1
    %972 = vsyncpa [#allocation4], 1
    %s973 = scalar_lea.sflag [#allocation4], 1
    %974 = vsyncpa %s973, 1

</llo_original>
